<compile_context>
chip_gen: v5e
topology: v5e:2x2
jax: 0.10.0
libtpu: 0.0.40
codegen_flags: <defaults>
</compile_context>

<pallas_src>
import jax
import jax.numpy as jnp
from jax import lax
from jax.experimental import pallas as pl
from jax.experimental.pallas import tpu as pltpu


# ----------------------------------------------------------------------------
# small math helpers (kernel-side)
# ----------------------------------------------------------------------------
def _erf(z):
    # Abramowitz & Stegun 7.1.26 polynomial (|err| < 1.5e-7): erf has no
    # guaranteed Mosaic lowering, so build it from exp (EUP-supported).
    a1, a2, a3, a4, a5 = (0.254829592, -0.284496736, 1.421413741,
                          -1.453152027, 1.061405429)
    p = 0.3275911
    s = jnp.where(z >= 0.0, 1.0, -1.0)
    za = jnp.abs(z)
    t = pl.reciprocal(1.0 + p * za, approx=True)        # EUP slot, not a VALU divide
    poly = ((((a5 * t + a4) * t + a3) * t + a2) * t + a1) * t
    return s * (1.0 - poly * jnp.exp(-za * za))


def _gelu_exact(z):
    # matches torch F.gelu default (erf-based, approximate='none')
    return 0.5 * z * (1.0 + _erf(z * 0.7071067811865476))


def _layer_norm(v, g, eps=1e-5):
    # torch LayerNorm variant: biased var over channels, eps=1e-5 (f32), scale g
    mu = jnp.mean(v, axis=-1, keepdims=True)
    var = jnp.mean((v - mu) * (v - mu), axis=-1, keepdims=True)
    return (v - mu) * lax.rsqrt(var + eps) * g


# ----------------------------------------------------------------------------
# phase 1: per-batch K/V projections (lane-dense (Nk, inner) bf16 outputs)
# ----------------------------------------------------------------------------
def _kv_kernel(x_ref, ctx_ref, g1_ref, wk1_ref, wv1_ref, wk2_ref, wv2_ref,
               k1_ref, v1_ref, k2_ref, v2_ref):
    bf16, f32 = jnp.bfloat16, jnp.float32
    # attn1 keys/values come from norm1(x); attn2's come from the RAW context.
    xn = _layer_norm(x_ref[0], g1_ref[...]).astype(bf16)            # (N, dim)
    k1_ref[0] = jnp.dot(xn, wk1_ref[...], preferred_element_type=f32).astype(bf16)
    v1_ref[0] = jnp.dot(xn, wv1_ref[...], preferred_element_type=f32).astype(bf16)
    ctx = ctx_ref[0].astype(bf16)                                    # (Nc, cdim)
    k2_ref[0] = jnp.dot(ctx, wk2_ref[...], preferred_element_type=f32).astype(bf16)
    v2_ref[0] = jnp.dot(ctx, wv2_ref[...], preferred_element_type=f32).astype(bf16)


# ----------------------------------------------------------------------------
# phase 2: per-query-tile fused transformer block
# ----------------------------------------------------------------------------
def _make_block_kernel(dim, heads, d_head, ff_inner, n_kv1, n_kv2,
                       kv_blk1, kv_blk2):
    inner = heads * d_head
    scale = d_head ** -0.5
    bf16, f32 = jnp.bfloat16, jnp.float32

    def split_heads(t):
        # (M, inner) -> (heads, M, d_head); XLU-side relayout via static lane
        # slices (portable equivalent of the reshape 'm(hd)->hmd').
        return jnp.stack([t[:, h * d_head:(h + 1) * d_head]
                          for h in range(heads)], axis=0)

    def merge_heads(t):
        # (heads, M, d_head) -> (M, inner) lane concat feeding the fused out-proj
        return jnp.concatenate([t[h] for h in range(heads)], axis=-1)

    def attend(qh, k_ref, v_ref, n_kv, kv_blk):
        # qh: (heads, TQ, d_head) bf16 with the softmax scale already folded in.
        # K/V are lane-dense (1, n_kv, inner) bf16 VMEM refs, consumed in blocks
        # of kv_blk rows (online softmax) so only a (heads, TQ, kv_blk) f32
        # score tile is ever live.
        tq = qh.shape[1]
        nblk = n_kv // kv_blk

        def kv_block(ref, i):
            if nblk == 1:                       # single block: plain full view
                return ref[0]
            start = pl.multiple_of(i * kv_blk, kv_blk)
            return ref[0, pl.ds(start, kv_blk), :]

        def body(i, carry):
            m, l, acc = carry
            kb = split_heads(kv_block(k_ref, i))             # (h, kv_blk, d)
            vb = split_heads(kv_block(v_ref, i))
            s = jnp.einsum("hqd,hkd->hqk", qh, kb,
                           preferred_element_type=f32)       # f32 scores
            m_new = jnp.maximum(m, jnp.max(s, axis=-1, keepdims=True))
            alpha = jnp.exp(m - m_new)
            # TODO(synk): compute the exponent in bf16 on v6e/v7x (bf16 EUP).
            p = jnp.exp(s - m_new)
            l_new = alpha * l + jnp.sum(p, axis=-1, keepdims=True)
            acc_new = alpha * acc + jnp.einsum(
                "hqk,hkd->hqd", p.astype(bf16), vb, preferred_element_type=f32)
            return m_new, l_new, acc_new

        init = (jnp.full((heads, tq, 1), -1e30, f32),
                jnp.zeros((heads, tq, 1), f32),
                jnp.zeros((heads, tq, d_head), f32))
        if nblk == 1:
            m, l, acc = body(0, init)
        else:
            m, l, acc = lax.fori_loop(0, nblk, body, init, unroll=True)
        o = acc * pl.reciprocal(l, approx=True)              # softmax normalize
        return merge_heads(o).astype(bf16)                   # (TQ, inner)

    def kernel(xq_ref,
               k1_ref, v1_ref, k2_ref, v2_ref,
               g1_ref, wq1_ref, wo1_ref, bo1_ref,
               g2_ref, wq2_ref, wo2_ref, bo2_ref,
               g3_ref, wpv_ref, bpv_ref, wpg_ref, bpg_ref, wf_ref, bf_ref,
               o_ref):
        xq = xq_ref[0]                                       # (TQ, dim) f32

        # ---- x = attn1(norm1(x)) + x  (self-attention, hoisted K1/V1) -------
        xn1 = _layer_norm(xq, g1_ref[...]).astype(bf16)
        q1 = (jnp.dot(xn1, wq1_ref[...], preferred_element_type=f32)
              * scale).astype(bf16)                          # scale folded into q
        o1 = attend(split_heads(q1), k1_ref, v1_ref, n_kv1, kv_blk1)
        x1 = (jnp.dot(o1, wo1_ref[...], preferred_element_type=f32)
              + bo1_ref[...] + xq)                           # Dropout(0.0) = id

        # ---- x = attn2(norm2(x), context) + x  (cross-attention) ------------
        xn2 = _layer_norm(x1, g2_ref[...]).astype(bf16)
        q2 = (jnp.dot(xn2, wq2_ref[...], preferred_element_type=f32)
              * scale).astype(bf16)
        o2 = attend(split_heads(q2), k2_ref, v2_ref, n_kv2, kv_blk2)
        x2 = (jnp.dot(o2, wo2_ref[...], preferred_element_type=f32)
              + bo2_ref[...] + x1)

        # ---- x = ff(norm3(x)) + x  (GEGLU feed-forward, gated_ff=True) ------
        xn3 = _layer_norm(x2, g3_ref[...]).astype(bf16)
        val = jnp.dot(xn3, wpv_ref[...], preferred_element_type=f32) + bpv_ref[...]
        gate = jnp.dot(xn3, wpg_ref[...], preferred_element_type=f32) + bpg_ref[...]
        hidden = (val * _gelu_exact(gate)).astype(bf16)
        ff = jnp.dot(hidden, wf_ref[...], preferred_element_type=f32) + bf_ref[...]
        o_ref[0] = ff + x2

    return kernel


# ----------------------------------------------------------------------------
# parameters (lane-dense layouts: Conv1d(out,in,1) weight == (in, out) here)
# ----------------------------------------------------------------------------
def init_params(key, dim, heads, d_head, context_dim=None, ff_mult=4):
    context_dim = dim if context_dim is None else context_dim
    inner = heads * d_head
    ff_inner = int(dim * ff_mult)
    ks = jax.random.split(key, 16)

    def w(k, shape, s=0.05, dtype=jnp.bfloat16):
        return (s * jax.random.normal(k, shape, jnp.float32)).astype(dtype)

    params = dict(
        g1=jnp.ones((1, dim), jnp.float32),
        wq1=w(ks[0], (dim, inner)),
        wk1=w(ks[1], (dim, inner)),
        wv1=w(ks[2], (dim, inner)),
        wo1=w(ks[3], (inner, dim)),
        bo1=w(ks[4], (1, dim), dtype=jnp.float32),
        g2=jnp.ones((1, dim), jnp.float32),
        wq2=w(ks[5], (dim, inner)),
        wk2=w(ks[6], (context_dim, inner)),
        wv2=w(ks[7], (context_dim, inner)),
        wo2=w(ks[8], (inner, dim)),
        bo2=w(ks[9], (1, dim), dtype=jnp.float32),
        g3=jnp.ones((1, dim), jnp.float32),
        wpv=w(ks[10], (dim, ff_inner)),
        bpv=w(ks[11], (1, ff_inner), dtype=jnp.float32),
        wpg=w(ks[12], (dim, ff_inner)),
        bpg=w(ks[13], (1, ff_inner), dtype=jnp.float32),
        wf=w(ks[14], (ff_inner, dim)),
        bf=w(ks[15], (1, dim), dtype=jnp.float32),
    )
    return params, ff_inner


def _vmem_limit_bytes():
    # Explicit scoped-VMEM budget: ~3/4 of physical so it adapts per TPU
    # generation (128 MiB on v5e/v6e, 64 MiB per core on v7x), with headroom.
    try:
        cap = pltpu.get_tpu_info().vmem_capacity_bytes
    except Exception:
        cap = 64 * 1024 * 1024      # conservative fallback (v7x per-core VMEM)
    return int(cap) * 3 // 4


# ----------------------------------------------------------------------------
# wrapper
# ----------------------------------------------------------------------------
def basic_transformer_block(x_ncl, context, params, *, dim, heads, d_head,
                            ff_inner, q_tile=128, kv_block=512):
    B, C, N = x_ncl.shape
    assert C == dim
    # TODO(synk): context=None (attn2 self-conditioning on norm2(x), needs the
    # full attn1 output for K/V) and the optional attention mask are not
    # supported by this single-pass tiled kernel.
    assert context is not None
    inner = heads * d_head
    context_dim = params["wk2"].shape[0]
    ctx_ncl = context.reshape(B, context_dim, -1)    # mirrors context.view(...)
    Nc = ctx_ncl.shape[-1]

    x_nlc = jnp.transpose(x_ncl, (0, 2, 1)).astype(jnp.float32)      # (B, N, dim)
    ctx_nlc = jnp.transpose(ctx_ncl, (0, 2, 1)).astype(jnp.float32)  # (B, Nc, cdim)

    vmem_limit = _vmem_limit_bytes()
    bf16 = jnp.bfloat16

    # ---- phase 1: hoisted per-batch K/V projections --------------------------
    k1, v1, k2, v2 = pl.pallas_call(
        _kv_kernel,
        grid=(B,),
        in_specs=[pl.BlockSpec((1, N, dim), lambda b: (b, 0, 0)),
                  pl.BlockSpec((1, Nc, context_dim), lambda b: (b, 0, 0)),
                  pl.BlockSpec((1, dim), lambda b: (0, 0)),
                  pl.BlockSpec((dim, inner), lambda b: (0, 0)),
                  pl.BlockSpec((dim, inner), lambda b: (0, 0)),
                  pl.BlockSpec((context_dim, inner), lambda b: (0, 0)),
                  pl.BlockSpec((context_dim, inner), lambda b: (0, 0))],
        out_specs=(pl.BlockSpec((1, N, inner), lambda b: (b, 0, 0)),
                   pl.BlockSpec((1, N, inner), lambda b: (b, 0, 0)),
                   pl.BlockSpec((1, Nc, inner), lambda b: (b, 0, 0)),
                   pl.BlockSpec((1, Nc, inner), lambda b: (b, 0, 0))),
        out_shape=(jax.ShapeDtypeStruct((B, N, inner), bf16),
                   jax.ShapeDtypeStruct((B, N, inner), bf16),
                   jax.ShapeDtypeStruct((B, Nc, inner), bf16),
                   jax.ShapeDtypeStruct((B, Nc, inner), bf16)),
        compiler_params=pltpu.CompilerParams(
            dimension_semantics=("parallel",),
            vmem_limit_bytes=vmem_limit),
    )(x_nlc, ctx_nlc, params["g1"], params["wk1"], params["wv1"],
      params["wk2"], params["wv2"])

    # ---- phase 2: per-query-tile fused block ---------------------------------
    # TQ: multiple of 8 sublanes; 128 is a good default across v5e/v6e/v7x.
    TQ = q_tile if (N % q_tile == 0) else N
    KB1 = kv_block if (N % kv_block == 0) else N     # online-softmax KV block
    KB2 = kv_block if (Nc % kv_block == 0) else Nc
    grid = (B, N // TQ)

    kernel = _make_block_kernel(dim, heads, d_head, ff_inner, N, Nc, KB1, KB2)

    weight_names = ("g1", "wq1", "wo1", "bo1",
                    "g2", "wq2", "wo2", "bo2",
                    "g3", "wpv", "bpv", "wpg", "bpg", "wf", "bf")
    ws = [params[k] for k in weight_names]

    def const_spec(a):
        # grid-constant block: revisited (not re-fetched) across the whole grid
        return pl.BlockSpec(a.shape, lambda b, q, nd=a.ndim: (0,) * nd)

    flops = 2 * B * (
        N * dim * inner + 2 * N * N * inner + N * inner * dim          # attn1
        + N * dim * inner + 2 * N * Nc * inner + N * inner * dim       # attn2
        + 3 * N * dim * ff_inner)                                      # GEGLU ff
    transc = B * N * (heads * (N + Nc) + ff_inner)
    bytes_acc = int(4 * 2 * B * N * dim
                    + 2 * (k1.size + v1.size + k2.size + v2.size)
                    + sum(int(a.size) * a.dtype.itemsize for a in ws))
    cost = pl.CostEstimate(flops=int(flops), transcendentals=int(transc),
                           bytes_accessed=bytes_acc)

    out = pl.pallas_call(
        kernel,
        grid=grid,
        in_specs=[pl.BlockSpec((1, TQ, dim), lambda b, q: (b, q, 0)),
                  pl.BlockSpec((1, N, inner), lambda b, q: (b, 0, 0)),
                  pl.BlockSpec((1, N, inner), lambda b, q: (b, 0, 0)),
                  pl.BlockSpec((1, Nc, inner), lambda b, q: (b, 0, 0)),
                  pl.BlockSpec((1, Nc, inner), lambda b, q: (b, 0, 0))]
                 + [const_spec(a) for a in ws],
        out_specs=pl.BlockSpec((1, TQ, dim), lambda b, q: (b, q, 0)),
        out_shape=jax.ShapeDtypeStruct((B, N, dim), jnp.float32),
        compiler_params=pltpu.CompilerParams(
            dimension_semantics=("parallel", "parallel"),
            vmem_limit_bytes=vmem_limit),
        cost_estimate=cost,
    )(x_nlc, k1, v1, k2, v2, *ws)

    return jnp.transpose(out, (0, 2, 1))             # back to PyTorch NCL


# ----------------------------------------------------------------------------
# pure-JAX f32 reference mirroring the PyTorch forward (self-check only)
# ----------------------------------------------------------------------------
def _reference_block(x_ncl, context, params, *, dim, heads, d_head, ff_inner):
    f32 = jnp.float32
    B, C, N = x_ncl.shape
    cdim = params["wk2"].shape[0]
    inner = heads * d_head
    x = jnp.transpose(x_ncl, (0, 2, 1)).astype(f32)
    ctx = jnp.transpose(context.reshape(B, cdim, -1), (0, 2, 1)).astype(f32)
    scale = d_head ** -0.5

    def ln(v, g):
        mu = jnp.mean(v, -1, keepdims=True)
        var = jnp.mean((v - mu) ** 2, -1, keepdims=True)
        return (v - mu) * lax.rsqrt(var + 1e-5) * g

    def heads_split(t):
        Bb, M, _ = t.shape
        return jnp.transpose(t.reshape(Bb, M, heads, d_head), (0, 2, 1, 3))

    def attn(xq, xkv, wq, wk, wv, wo, bo):
        wq, wk, wv, wo = (a.astype(f32) for a in (wq, wk, wv, wo))
        q = heads_split(xq @ wq)
        k = heads_split(xkv @ wk)
        v = heads_split(xkv @ wv)
        sim = jnp.einsum("bhqd,bhkd->bhqk", q, k) * scale
        p = jax.nn.softmax(sim, axis=-1)
        o = jnp.einsum("bhqk,bhkd->bhqd", p, v)
        o = jnp.transpose(o, (0, 2, 1, 3)).reshape(xq.shape[0], -1, inner)
        return jnp.einsum("bni,id->bnd", o, wo) + bo

    xn1 = ln(x, params["g1"])
    x = attn(xn1, xn1, params["wq1"], params["wk1"], params["wv1"],
             params["wo1"], params["bo1"]) + x
    x = attn(ln(x, params["g2"]), ctx, params["wq2"], params["wk2"],
             params["wv2"], params["wo2"], params["bo2"]) + x
    xn3 = ln(x, params["g3"])
    val = xn3 @ params["wpv"].astype(f32) + params["bpv"]
    gate = xn3 @ params["wpg"].astype(f32) + params["bpg"]
    x = (val * jax.nn.gelu(gate, approximate=False)) @ params["wf"].astype(f32) \
        + params["bf"] + x
    return jnp.transpose(x, (0, 2, 1))


if __name__ == "__main__":
    B, dim, N = 2, 32, 16
    heads, d_head = 4, 8

    key = jax.random.PRNGKey(0)
    kx, kc, kp = jax.random.split(key, 3)
    x = jax.random.normal(kx, (B, dim, N), jnp.float32)        # NCL, like torch
    context = jax.random.normal(kc, (B, dim, N), jnp.float32)  # context_dim=dim
    params, ff_inner = init_params(kp, dim, heads, d_head)

    # q_tile=8 -> 2 query tiles per batch element: exercises the fully-parallel
    # query-tiled grid and the hoisted per-batch K/V projection kernel.
    out = basic_transformer_block(x, context, params, dim=dim, heads=heads,
                                  d_head=d_head, ff_inner=ff_inner, q_tile=8)
    out = jax.block_until_ready(out)
    assert out.shape == x.shape and out.dtype == jnp.float32

    ref = jax.block_until_ready(
        _reference_block(x, context, params, dim=dim, heads=heads,
                         d_head=d_head, ff_inner=ff_inner))
    err = float(jnp.max(jnp.abs(out - ref)))
    assert err < 0.1, f"kernel/reference mismatch: max|diff|={err}"
    print("KERNEL_OK")
</pallas_src>

<mosaic_0001>
module attributes {stable_mosaic.version = 11 : i64} {
  func.func @_kv_kernel(%arg0: i32, %arg1: memref<1x16x32xf32, #tpu.memory_space<vmem>>, %arg2: memref<1x16x32xf32, #tpu.memory_space<vmem>>, %arg3: memref<1x32xf32, #tpu.memory_space<vmem>>, %arg4: memref<32x32xbf16, #tpu.memory_space<vmem>>, %arg5: memref<32x32xbf16, #tpu.memory_space<vmem>>, %arg6: memref<32x32xbf16, #tpu.memory_space<vmem>>, %arg7: memref<32x32xbf16, #tpu.memory_space<vmem>>, %arg8: memref<1x16x32xbf16, #tpu.memory_space<vmem>>, %arg9: memref<1x16x32xbf16, #tpu.memory_space<vmem>>, %arg10: memref<1x16x32xbf16, #tpu.memory_space<vmem>>, %arg11: memref<1x16x32xbf16, #tpu.memory_space<vmem>>) attributes {dimension_semantics = [#tpu.dimension_semantics<parallel>], iteration_bounds = array<i64: 2>, scalar_prefetch = 0 : i64, scratch_operands = 0 : i64, tpu.core_type = #tpu.core_type<tc>, window_params = [{transform_indices = @transform_0, window_bounds = array<i64: 1, 16, 32>}, {transform_indices = @transform_1, window_bounds = array<i64: 1, 16, 32>}, {pipeline_mode = #tpu.pipeline_mode<synchronous>, transform_indices = @transform_2, window_bounds = array<i64: 1, 32>}, {pipeline_mode = #tpu.pipeline_mode<synchronous>, transform_indices = @transform_3, window_bounds = array<i64: 32, 32>}, {pipeline_mode = #tpu.pipeline_mode<synchronous>, transform_indices = @transform_4, window_bounds = array<i64: 32, 32>}, {pipeline_mode = #tpu.pipeline_mode<synchronous>, transform_indices = @transform_5, window_bounds = array<i64: 32, 32>}, {pipeline_mode = #tpu.pipeline_mode<synchronous>, transform_indices = @transform_6, window_bounds = array<i64: 32, 32>}, {transform_indices = @transform_7, window_bounds = array<i64: 1, 16, 32>}, {transform_indices = @transform_8, window_bounds = array<i64: 1, 16, 32>}, {transform_indices = @transform_9, window_bounds = array<i64: 1, 16, 32>}, {transform_indices = @transform_10, window_bounds = array<i64: 1, 16, 32>}]} {
    %c0 = arith.constant 0 : index
    %c0_0 = arith.constant 0 : index
    %c0_1 = arith.constant 0 : index
    %0 = vector.load %arg1[%c0, %c0_0, %c0_1] : memref<1x16x32xf32, #tpu.memory_space<vmem>>, vector<1x16x32xf32>
    %1 = vector.shape_cast %0 : vector<1x16x32xf32> to vector<16x32xf32>
    %c0_2 = arith.constant 0 : index
    %c0_3 = arith.constant 0 : index
    %2 = vector.load %arg3[%c0_2, %c0_3] : memref<1x32xf32, #tpu.memory_space<vmem>>, vector<1x32xf32>
    %cst = arith.constant dense<0.000000e+00> : vector<16xf32>
    %3 = vector.multi_reduction <add>, %1, %cst [1] : vector<16x32xf32> to vector<16xf32>
    %4 = vector.shape_cast %3 : vector<16xf32> to vector<16x1xf32>
    %cst_4 = arith.constant 3.200000e+01 : f32
    %5 = vector.broadcast %cst_4 : f32 to vector<16x1xf32>
    %6 = arith.divf %4, %5 : vector<16x1xf32>
    %7 = vector.broadcast %6 : vector<16x1xf32> to vector<16x32xf32>
    %8 = arith.subf %1, %7 : vector<16x32xf32>
    %9 = vector.broadcast %6 : vector<16x1xf32> to vector<16x32xf32>
    %10 = arith.subf %1, %9 : vector<16x32xf32>
    %11 = arith.mulf %8, %10 : vector<16x32xf32>
    %cst_5 = arith.constant dense<0.000000e+00> : vector<16xf32>
    %12 = vector.multi_reduction <add>, %11, %cst_5 [1] : vector<16x32xf32> to vector<16xf32>
    %13 = vector.shape_cast %12 : vector<16xf32> to vector<16x1xf32>
    %cst_6 = arith.constant 3.200000e+01 : f32
    %14 = vector.broadcast %cst_6 : f32 to vector<16x1xf32>
    %15 = arith.divf %13, %14 : vector<16x1xf32>
    %16 = vector.broadcast %6 : vector<16x1xf32> to vector<16x32xf32>
    %17 = arith.subf %1, %16 : vector<16x32xf32>
    %cst_7 = arith.constant 9.99999974E-6 : f32
    %18 = vector.broadcast %cst_7 : f32 to vector<16x1xf32>
    %19 = arith.addf %15, %18 : vector<16x1xf32>
    %20 = math.rsqrt %19 : vector<16x1xf32>
    %21 = vector.broadcast %20 : vector<16x1xf32> to vector<16x32xf32>
    %22 = arith.mulf %17, %21 : vector<16x32xf32>
    %23 = vector.broadcast %2 : vector<1x32xf32> to vector<16x32xf32>
    %24 = arith.mulf %22, %23 : vector<16x32xf32>
    %25 = arith.truncf %24 : vector<16x32xf32> to vector<16x32xbf16>
    %c0_8 = arith.constant 0 : index
    %c0_9 = arith.constant 0 : index
    %26 = vector.load %arg4[%c0_8, %c0_9] : memref<32x32xbf16, #tpu.memory_space<vmem>>, vector<32x32xbf16>
    %cst_10 = arith.constant dense<0.000000e+00> : vector<16x32xf32>
    %27 = tpu.matmul %25, %26, %cst_10 {dimension_numbers = #tpu.dot_dimension_numbers<[1], [0], [0], [1], [0, 0, 1, 1], [], []>} : vector<16x32xbf16>, vector<32x32xbf16>, vector<16x32xf32> -> vector<16x32xf32>
    %28 = arith.truncf %27 : vector<16x32xf32> to vector<16x32xbf16>
    %c0_11 = arith.constant 0 : index
    %c0_12 = arith.constant 0 : index
    %c0_13 = arith.constant 0 : index
    %29 = vector.load %arg8[%c0_11, %c0_12, %c0_13] : memref<1x16x32xbf16, #tpu.memory_space<vmem>>, vector<1x16x32xbf16>
    %30 = vector.shape_cast %29 : vector<1x16x32xbf16> to vector<16x32xbf16>
    %31 = vector.shape_cast %28 : vector<16x32xbf16> to vector<1x16x32xbf16>
    tpu.vector_store %arg8[%c0_11, %c0_12, %c0_13], %31 {strides = array<i32>} : memref<1x16x32xbf16, #tpu.memory_space<vmem>>, vector<1x16x32xbf16>,
    %c0_14 = arith.constant 0 : index
    %c0_15 = arith.constant 0 : index
    %32 = vector.load %arg5[%c0_14, %c0_15] : memref<32x32xbf16, #tpu.memory_space<vmem>>, vector<32x32xbf16>
    %cst_16 = arith.constant dense<0.000000e+00> : vector<16x32xf32>
    %33 = tpu.matmul %25, %32, %cst_16 {dimension_numbers = #tpu.dot_dimension_numbers<[1], [0], [0], [1], [0, 0, 1, 1], [], []>} : vector<16x32xbf16>, vector<32x32xbf16>, vector<16x32xf32> -> vector<16x32xf32>
    %34 = arith.truncf %33 : vector<16x32xf32> to vector<16x32xbf16>
    %c0_17 = arith.constant 0 : index
    %c0_18 = arith.constant 0 : index
    %c0_19 = arith.constant 0 : index
    %35 = vector.load %arg9[%c0_17, %c0_18, %c0_19] : memref<1x16x32xbf16, #tpu.memory_space<vmem>>, vector<1x16x32xbf16>
    %36 = vector.shape_cast %35 : vector<1x16x32xbf16> to vector<16x32xbf16>
    %37 = vector.shape_cast %34 : vector<16x32xbf16> to vector<1x16x32xbf16>
    tpu.vector_store %arg9[%c0_17, %c0_18, %c0_19], %37 {strides = array<i32>} : memref<1x16x32xbf16, #tpu.memory_space<vmem>>, vector<1x16x32xbf16>,
    %c0_20 = arith.constant 0 : index
    %c0_21 = arith.constant 0 : index
    %c0_22 = arith.constant 0 : index
    %38 = vector.load %arg2[%c0_20, %c0_21, %c0_22] : memref<1x16x32xf32, #tpu.memory_space<vmem>>, vector<1x16x32xf32>
    %39 = vector.shape_cast %38 : vector<1x16x32xf32> to vector<16x32xf32>
    %40 = arith.truncf %39 : vector<16x32xf32> to vector<16x32xbf16>
    %c0_23 = arith.constant 0 : index
    %c0_24 = arith.constant 0 : index
    %41 = vector.load %arg6[%c0_23, %c0_24] : memref<32x32xbf16, #tpu.memory_space<vmem>>, vector<32x32xbf16>
    %cst_25 = arith.constant dense<0.000000e+00> : vector<16x32xf32>
    %42 = tpu.matmul %40, %41, %cst_25 {dimension_numbers = #tpu.dot_dimension_numbers<[1], [0], [0], [1], [0, 0, 1, 1], [], []>} : vector<16x32xbf16>, vector<32x32xbf16>, vector<16x32xf32> -> vector<16x32xf32>
    %43 = arith.truncf %42 : vector<16x32xf32> to vector<16x32xbf16>
    %c0_26 = arith.constant 0 : index
    %c0_27 = arith.constant 0 : index
    %c0_28 = arith.constant 0 : index
    %44 = vector.load %arg10[%c0_26, %c0_27, %c0_28] : memref<1x16x32xbf16, #tpu.memory_space<vmem>>, vector<1x16x32xbf16>
    %45 = vector.shape_cast %44 : vector<1x16x32xbf16> to vector<16x32xbf16>
    %46 = vector.shape_cast %43 : vector<16x32xbf16> to vector<1x16x32xbf16>
    tpu.vector_store %arg10[%c0_26, %c0_27, %c0_28], %46 {strides = array<i32>} : memref<1x16x32xbf16, #tpu.memory_space<vmem>>, vector<1x16x32xbf16>,
    %c0_29 = arith.constant 0 : index
    %c0_30 = arith.constant 0 : index
    %47 = vector.load %arg7[%c0_29, %c0_30] : memref<32x32xbf16, #tpu.memory_space<vmem>>, vector<32x32xbf16>
    %cst_31 = arith.constant dense<0.000000e+00> : vector<16x32xf32>
    %48 = tpu.matmul %40, %47, %cst_31 {dimension_numbers = #tpu.dot_dimension_numbers<[1], [0], [0], [1], [0, 0, 1, 1], [], []>} : vector<16x32xbf16>, vector<32x32xbf16>, vector<16x32xf32> -> vector<16x32xf32>
    %49 = arith.truncf %48 : vector<16x32xf32> to vector<16x32xbf16>
    %c0_32 = arith.constant 0 : index
    %c0_33 = arith.constant 0 : index
    %c0_34 = arith.constant 0 : index
    %50 = vector.load %arg11[%c0_32, %c0_33, %c0_34] : memref<1x16x32xbf16, #tpu.memory_space<vmem>>, vector<1x16x32xbf16>
    %51 = vector.shape_cast %50 : vector<1x16x32xbf16> to vector<16x32xbf16>
    %52 = vector.shape_cast %49 : vector<16x32xbf16> to vector<1x16x32xbf16>
    tpu.vector_store %arg11[%c0_32, %c0_33, %c0_34], %52 {strides = array<i32>} : memref<1x16x32xbf16, #tpu.memory_space<vmem>>, vector<1x16x32xbf16>,
    return
  }
  func.func @transform_0(%arg0: i32) -> (i32, i32, i32) {
    %c0_i32 = arith.constant 0 : i32
    %c0_i32_0 = arith.constant 0 : i32
    %c0_i32_1 = arith.constant 0 : i32
    return %arg0, %c0_i32, %c0_i32_0 : i32, i32, i32
  }
  func.func @transform_1(%arg0: i32) -> (i32, i32, i32) {
    %c0_i32 = arith.constant 0 : i32
    %c0_i32_0 = arith.constant 0 : i32
    %c0_i32_1 = arith.constant 0 : i32
    return %arg0, %c0_i32, %c0_i32_0 : i32, i32, i32
  }
  func.func @transform_2(%arg0: i32) -> (i32, i32) {
    %c0_i32 = arith.constant 0 : i32
    %c0_i32_0 = arith.constant 0 : i32
    %c0_i32_1 = arith.constant 0 : i32
    return %c0_i32, %c0_i32_0 : i32, i32
  }
  func.func @transform_3(%arg0: i32) -> (i32, i32) {
    %c0_i32 = arith.constant 0 : i32
    %c0_i32_0 = arith.constant 0 : i32
    %c0_i32_1 = arith.constant 0 : i32
    return %c0_i32, %c0_i32_0 : i32, i32
  }
  func.func @transform_4(%arg0: i32) -> (i32, i32) {
    %c0_i32 = arith.constant 0 : i32
    %c0_i32_0 = arith.constant 0 : i32
    %c0_i32_1 = arith.constant 0 : i32
    return %c0_i32, %c0_i32_0 : i32, i32
  }
  func.func @transform_5(%arg0: i32) -> (i32, i32) {
    %c0_i32 = arith.constant 0 : i32
    %c0_i32_0 = arith.constant 0 : i32
    %c0_i32_1 = arith.constant 0 : i32
    return %c0_i32, %c0_i32_0 : i32, i32
  }
  func.func @transform_6(%arg0: i32) -> (i32, i32) {
    %c0_i32 = arith.constant 0 : i32
    %c0_i32_0 = arith.constant 0 : i32
    %c0_i32_1 = arith.constant 0 : i32
    return %c0_i32, %c0_i32_0 : i32, i32
  }
  func.func @transform_7(%arg0: i32) -> (i32, i32, i32) {
    %c0_i32 = arith.constant 0 : i32
    %c0_i32_0 = arith.constant 0 : i32
    %c0_i32_1 = arith.constant 0 : i32
    return %arg0, %c0_i32, %c0_i32_0 : i32, i32, i32
  }
  func.func @transform_8(%arg0: i32) -> (i32, i32, i32) {
    %c0_i32 = arith.constant 0 : i32
    %c0_i32_0 = arith.constant 0 : i32
    %c0_i32_1 = arith.constant 0 : i32
    return %arg0, %c0_i32, %c0_i32_0 : i32, i32, i32
  }
  func.func @transform_9(%arg0: i32) -> (i32, i32, i32) {
    %c0_i32 = arith.constant 0 : i32
    %c0_i32_0 = arith.constant 0 : i32
    %c0_i32_1 = arith.constant 0 : i32
    return %arg0, %c0_i32, %c0_i32_0 : i32, i32, i32
  }
  func.func @transform_10(%arg0: i32) -> (i32, i32, i32) {
    %c0_i32 = arith.constant 0 : i32
    %c0_i32_0 = arith.constant 0 : i32
    %c0_i32_1 = arith.constant 0 : i32
    return %arg0, %c0_i32, %c0_i32_0 : i32, i32, i32
  }
}

</mosaic_0001>

<llo_original>
// kernel: tpu_custom_call.1
$region0: #{tpu_custom_call.1}
  #allocation0 [shape = 'u32[]', space=smem, size = 0x4, offset = 0x4, fixed_abs, tag = 'smem constant byte address 0x4 - core index']
  #allocation1 [shape = 'u32[72,128]{1,0:T(1,128)}', space=vmem, size = 0x9000, scoped, tag = 'internal scratch']
  %s0 = inlined_call_operand.hbm [shape: f32[2,16,32], index: 0, kind: input, shape index: {}]
  %s1 = inlined_call_operand.hbm [shape: f32[2,16,32], index: 1, kind: input, shape index: {}]
  %s2 = inlined_call_operand.vmem [shape: f32[1,32], index: 2, kind: input, shape index: {}]
  %s3 = inlined_call_operand.hbm [shape: bf16[32,32], index: 3, kind: input, shape index: {}]
  %s4 = inlined_call_operand.hbm [shape: bf16[32,32], index: 4, kind: input, shape index: {}]
  %s5 = inlined_call_operand.hbm [shape: bf16[32,32], index: 5, kind: input, shape index: {}]
  %s6 = inlined_call_operand.hbm [shape: bf16[32,32], index: 6, kind: input, shape index: {}]
  %s7 = inlined_call_operand.hbm [shape: bf16[2,16,32], index: 7, kind: output, shape index: {0}]
  %s8 = inlined_call_operand.hbm [shape: bf16[2,16,32], index: 8, kind: output, shape index: {1}]
  %s9 = inlined_call_operand.hbm [shape: bf16[2,16,32], index: 9, kind: output, shape index: {2}]
  %s10 = inlined_call_operand.hbm [shape: bf16[2,16,32], index: 10, kind: output, shape index: {3}]
  %11 = xla_tuple %s7, %s8, %s9, %s10
  %s12 = sld [smem:[#allocation0]]
  $region109: #{tpu_custom_call.1} parent=0
    _
  %s14 = ssub.s32 1, %s12
  %s15 = scalar_select 0, %s14, %s12
  $region1: #{tpu_custom_call.1} parent=0
    #allocation2 [shape = 'u8[16384]{0}', space=vmem, size = 0x4000, scoped, tag = 'input window, operand 0']
    #allocation3 [shape = 's32[2]{0}', space=sflag, size = 0x8, scoped, tag = 'scoped memory for tpu_custom_call.1']
    #allocation4 [shape = 's32[2]{0}', space=sflag, size = 0x8, scoped, tag = 'scoped memory for tpu_custom_call.1']
    #allocation5 [shape = 'u8[16384]{0}', space=vmem, size = 0x4000, scoped, tag = 'input window, operand 1']
    #allocation6 [shape = 's32[2]{0}', space=sflag, size = 0x8, scoped, tag = 'scoped memory for tpu_custom_call.1']
    #allocation7 [shape = 'u8[8192]{0}', space=vmem, size = 0x2000, scoped, tag = 'input window, operand 3, single buffered']
    #allocation8 [shape = 'u8[8192]{0}', space=vmem, size = 0x2000, scoped, tag = 'input window, operand 4, single buffered']
    #allocation9 [shape = 's32[1]{0}', space=sflag, size = 0x4, scoped, tag = 'scoped memory for tpu_custom_call.1']
    #allocation10 [shape = 'u8[8192]{0}', space=vmem, size = 0x2000, scoped, tag = 'input window, operand 5, single buffered']
    #allocation11 [shape = 'u8[8192]{0}', space=vmem, size = 0x2000, scoped, tag = 'input window, operand 6, single buffered']
    #allocation12 [shape = 's32[1]{0}', space=sflag, size = 0x4, scoped, tag = 'scoped memory for tpu_custom_call.1']
    #allocation13 [shape = 'u8[8192]{0}', space=vmem, size = 0x2000, scoped, tag = 'output window, operand 0']
    #allocation14 [shape = 'u8[8192]{0}', space=vmem, size = 0x2000, scoped, tag = 'output window, operand 1']
    #allocation15 [shape = 's32[2]{0}', space=sflag, size = 0x8, scoped, tag = 'scoped memory for tpu_custom_call.1']
    #allocation16 [shape = 'u8[8192]{0}', space=vmem, size = 0x2000, scoped, tag = 'output window, operand 2']
    #allocation17 [shape = 'u8[8192]{0}', space=vmem, size = 0x2000, scoped, tag = 'output window, operand 3']
    #allocation18 [shape = 's32[2]{0}', space=sflag, size = 0x8, scoped, tag = 'scoped memory for tpu_custom_call.1']
    %16 = vsyncpa [#allocation3], 0
    %s17 = scalar_lea.sflag [#allocation3], 1
    %18 = vsyncpa %s17, 0
    %19 = vsyncpa [#allocation6], 0
    %s20 = scalar_lea.sflag [#allocation6], 1
    %21 = vsyncpa %s20, 0
    %22 = vsyncpa [#allocation9], 0
    %23 = vsyncpa [#allocation12], 0
    %24 = vsyncpa [#allocation4], 0
    %s25 = scalar_lea.sflag [#allocation4], 1
    %26 = vsyncpa %s25, 0
    %27 = vsyncpa [#allocation15], 0
    %s28 = scalar_lea.sflag [#allocation15], 1
    %29 = vsyncpa %s28, 0
    %30 = vsyncpa [#allocation18], 0
    %s31 = scalar_lea.sflag [#allocation18], 1
    %32 = vsyncpa %s31, 0
    loop: start=0, step=1, limit=4
    $region2: #{tpu_custom_call.1} parent=1 // loop_pre_header
      _
    $region3: #{tpu_custom_call.1} parent=1 // loop_header
      %s34 = sphi 0, %s38
      %p35 = scmp.ge.s32.totalorder %s34, 4
      %s44 = sphi 0, %s46
      %s47 = sphi 0, %s44
      %s48 = sphi 0, %s47
      %s64 = sphi 0, %s48
      %s70 = sphi 0, %s72
      %s73 = sphi 0, %s70
      %s74 = sphi 0, %s73
      %s90 = sphi 0, %s74
      %s94 = sphi 0, %s94
      %s96 = sphi 0, %s94
      %s97 = sphi 0, %s96
      %s111 = sphi 0, %s97
      %s115 = sphi 0, %s115
      %s117 = sphi 0, %s115
      %s118 = sphi 0, %s117
      %s132 = sphi 0, %s118
      %s136 = sphi 0, %s136
      %s138 = sphi 0, %s136
      %s139 = sphi 0, %s138
      %s153 = sphi 0, %s139
      %s157 = sphi 0, %s157
      %s159 = sphi 0, %s157
      %s160 = sphi 0, %s159
      %s174 = sphi 0, %s160
      %s178 = sphi 0, %s178
      %s180 = sphi 0, %s178
      %s181 = sphi 0, %s180
      %s195 = sphi 0, %s181
      %s201 = sphi 0, %s203
      %s204 = sphi 0, %s201
      %s205 = sphi 0, %s204
      %s221 = sphi 0, %s205
      %s227 = sphi 0, %s229
      %s230 = sphi 0, %s227
      %s231 = sphi 0, %s230
      %s247 = sphi 0, %s231
      %s253 = sphi 0, %s255
      %s256 = sphi 0, %s253
      %s257 = sphi 0, %s256
      %s273 = sphi 0, %s257
      %s279 = sphi 0, %s281
      %s282 = sphi 0, %s279
      %s283 = sphi 0, %s282
      %s299 = sphi 0, %s283
    $region4: #{tpu_custom_call.1} parent=1 // loop_header_branch
      %37 = sbr.rel (%p35) target = $region8
    $region5: #{tpu_custom_call.1} parent=1 // loop_body
      %s39 = ssub.s32 %s34, 1
      %s40 = ssub.s32 %s34, 2
      %s41 = sadd.s32 %s34, 1
      %s42 = ssub.s32 %s34, %s41
      %p43 = scmp.eq.s32.totalorder %s42, 0
      %s45 = sadd.s32 %s44, 1
      %s46 = scalar_select %p43, %s44, %s45
      %p49 = pneg %p43
      %p50 = scmp.eq.s32.totalorder %s34, 1
      %p51 = por %p49, %p50
      %p52 = scmp.ne.s32.totalorder %s44, %s47
      %p53 = scmp.eq.s32.totalorder %s34, 0
      %p54 = por %p52, %p53
      %p55 = scmp.ne.s32.totalorder %s44, %s47
      %p56 = scmp.eq.s32.totalorder %s39, 1
      %p57 = por %p55, %p56
      %p58 = scmp.ne.s32.totalorder %s47, %s48
      %p59 = scmp.eq.s32.totalorder %s39, 0
      %p60 = por %p58, %p59
      %p61 = scmp.ne.s32.totalorder %s47, %s48
      %p62 = scmp.eq.s32.totalorder %s40, 1
      %p63 = por %p61, %p62
      %p65 = scmp.ne.s32.totalorder %s48, %s64
      %p66 = scmp.eq.s32.totalorder %s40, 0
      %p67 = por %p65, %p66
      %s68 = ssub.s32 %s34, %s41
      %p69 = scmp.eq.s32.totalorder %s68, 0
      %s71 = sadd.s32 %s70, 1
      %s72 = scalar_select %p69, %s70, %s71
      %p75 = pneg %p69
      %p76 = scmp.eq.s32.totalorder %s34, 1
      %p77 = por %p75, %p76
      %p78 = scmp.ne.s32.totalorder %s70, %s73
      %p79 = scmp.eq.s32.totalorder %s34, 0
      %p80 = por %p78, %p79
      %p81 = scmp.ne.s32.totalorder %s70, %s73
      %p82 = scmp.eq.s32.totalorder %s39, 1
      %p83 = por %p81, %p82
      %p84 = scmp.ne.s32.totalorder %s73, %s74
      %p85 = scmp.eq.s32.totalorder %s39, 0
      %p86 = por %p84, %p85
      %p87 = scmp.ne.s32.totalorder %s73, %s74
      %p88 = scmp.eq.s32.totalorder %s40, 1
      %p89 = por %p87, %p88
      %p91 = scmp.ne.s32.totalorder %s74, %s90
      %p92 = scmp.eq.s32.totalorder %s40, 0
      %p93 = por %p91, %p92
      %s95 = sadd.s32 %s94, 1
      %p98 = scmp.eq.s32.totalorder %s34, 1
      %p99 = scmp.ne.s32.totalorder %s94, %s96
      %p100 = scmp.eq.s32.totalorder %s34, 0
      %p101 = por %p99, %p100
      %p102 = scmp.ne.s32.totalorder %s94, %s96
      %p103 = scmp.eq.s32.totalorder %s39, 1
      %p104 = por %p102, %p103
      %p105 = scmp.ne.s32.totalorder %s96, %s97
      %p106 = scmp.eq.s32.totalorder %s39, 0
      %p107 = por %p105, %p106
      %p108 = scmp.ne.s32.totalorder %s96, %s97
      %p109 = scmp.eq.s32.totalorder %s40, 1
      %p110 = por %p108, %p109
      %p112 = scmp.ne.s32.totalorder %s97, %s111
      %p113 = scmp.eq.s32.totalorder %s40, 0
      %p114 = por %p112, %p113
      %s116 = sadd.s32 %s115, 1
      %p119 = scmp.eq.s32.totalorder %s34, 1
      %p120 = scmp.ne.s32.totalorder %s115, %s117
      %p121 = scmp.eq.s32.totalorder %s34, 0
      %p122 = por %p120, %p121
      %p123 = scmp.ne.s32.totalorder %s115, %s117
      %p124 = scmp.eq.s32.totalorder %s39, 1
      %p125 = por %p123, %p124
      %p126 = scmp.ne.s32.totalorder %s117, %s118
      %p127 = scmp.eq.s32.totalorder %s39, 0
      %p128 = por %p126, %p127
      %p129 = scmp.ne.s32.totalorder %s117, %s118
      %p130 = scmp.eq.s32.totalorder %s40, 1
      %p131 = por %p129, %p130
      %p133 = scmp.ne.s32.totalorder %s118, %s132
      %p134 = scmp.eq.s32.totalorder %s40, 0
      %p135 = por %p133, %p134
      %s137 = sadd.s32 %s136, 1
      %p140 = scmp.eq.s32.totalorder %s34, 1
      %p141 = scmp.ne.s32.totalorder %s136, %s138
      %p142 = scmp.eq.s32.totalorder %s34, 0
      %p143 = por %p141, %p142
      %p144 = scmp.ne.s32.totalorder %s136, %s138
      %p145 = scmp.eq.s32.totalorder %s39, 1
      %p146 = por %p144, %p145
      %p147 = scmp.ne.s32.totalorder %s138, %s139
      %p148 = scmp.eq.s32.totalorder %s39, 0
      %p149 = por %p147, %p148
      %p150 = scmp.ne.s32.totalorder %s138, %s139
      %p151 = scmp.eq.s32.totalorder %s40, 1
      %p152 = por %p150, %p151
      %p154 = scmp.ne.s32.totalorder %s139, %s153
      %p155 = scmp.eq.s32.totalorder %s40, 0
      %p156 = por %p154, %p155
      %s158 = sadd.s32 %s157, 1
      %p161 = scmp.eq.s32.totalorder %s34, 1
      %p162 = scmp.ne.s32.totalorder %s157, %s159
      %p163 = scmp.eq.s32.totalorder %s34, 0
      %p164 = por %p162, %p163
      %p165 = scmp.ne.s32.totalorder %s157, %s159
      %p166 = scmp.eq.s32.totalorder %s39, 1
      %p167 = por %p165, %p166
      %p168 = scmp.ne.s32.totalorder %s159, %s160
      %p169 = scmp.eq.s32.totalorder %s39, 0
      %p170 = por %p168, %p169
      %p171 = scmp.ne.s32.totalorder %s159, %s160
      %p172 = scmp.eq.s32.totalorder %s40, 1
      %p173 = por %p171, %p172
      %p175 = scmp.ne.s32.totalorder %s160, %s174
      %p176 = scmp.eq.s32.totalorder %s40, 0
      %p177 = por %p175, %p176
      %s179 = sadd.s32 %s178, 1
      %p182 = scmp.eq.s32.totalorder %s34, 1
      %p183 = scmp.ne.s32.totalorder %s178, %s180
      %p184 = scmp.eq.s32.totalorder %s34, 0
      %p185 = por %p183, %p184
      %p186 = scmp.ne.s32.totalorder %s178, %s180
      %p187 = scmp.eq.s32.totalorder %s39, 1
      %p188 = por %p186, %p187
      %p189 = scmp.ne.s32.totalorder %s180, %s181
      %p190 = scmp.eq.s32.totalorder %s39, 0
      %p191 = por %p189, %p190
      %p192 = scmp.ne.s32.totalorder %s180, %s181
      %p193 = scmp.eq.s32.totalorder %s40, 1
      %p194 = por %p192, %p193
      %p196 = scmp.ne.s32.totalorder %s181, %s195
      %p197 = scmp.eq.s32.totalorder %s40, 0
      %p198 = por %p196, %p197
      %s199 = ssub.s32 %s34, %s41
      %p200 = scmp.eq.s32.totalorder %s199, 0
      %s202 = sadd.s32 %s201, 1
      %s203 = scalar_select %p200, %s201, %s202
      %p206 = pneg %p200
      %p207 = scmp.eq.s32.totalorder %s34, 1
      %p208 = por %p206, %p207
      %p209 = scmp.ne.s32.totalorder %s201, %s204
      %p210 = scmp.eq.s32.totalorder %s34, 0
      %p211 = por %p209, %p210
      %p212 = scmp.ne.s32.totalorder %s201, %s204
      %p213 = scmp.eq.s32.totalorder %s39, 1
      %p214 = por %p212, %p213
      %p215 = scmp.ne.s32.totalorder %s204, %s205
      %p216 = scmp.eq.s32.totalorder %s39, 0
      %p217 = por %p215, %p216
      %p218 = scmp.ne.s32.totalorder %s204, %s205
      %p219 = scmp.eq.s32.totalorder %s40, 1
      %p220 = por %p218, %p219
      %p222 = scmp.ne.s32.totalorder %s205, %s221
      %p223 = scmp.eq.s32.totalorder %s40, 0
      %p224 = por %p222, %p223
      %s225 = ssub.s32 %s34, %s41
      %p226 = scmp.eq.s32.totalorder %s225, 0
      %s228 = sadd.s32 %s227, 1
      %s229 = scalar_select %p226, %s227, %s228
      %p232 = pneg %p226
      %p233 = scmp.eq.s32.totalorder %s34, 1
      %p234 = por %p232, %p233
      %p235 = scmp.ne.s32.totalorder %s227, %s230
      %p236 = scmp.eq.s32.totalorder %s34, 0
      %p237 = por %p235, %p236
      %p238 = scmp.ne.s32.totalorder %s227, %s230
      %p239 = scmp.eq.s32.totalorder %s39, 1
      %p240 = por %p238, %p239
      %p241 = scmp.ne.s32.totalorder %s230, %s231
      %p242 = scmp.eq.s32.totalorder %s39, 0
      %p243 = por %p241, %p242
      %p244 = scmp.ne.s32.totalorder %s230, %s231
      %p245 = scmp.eq.s32.totalorder %s40, 1
      %p246 = por %p244, %p245
      %p248 = scmp.ne.s32.totalorder %s231, %s247
      %p249 = scmp.eq.s32.totalorder %s40, 0
      %p250 = por %p248, %p249
      %s251 = ssub.s32 %s34, %s41
      %p252 = scmp.eq.s32.totalorder %s251, 0
      %s254 = sadd.s32 %s253, 1
      %s255 = scalar_select %p252, %s253, %s254
      %p258 = pneg %p252
      %p259 = scmp.eq.s32.totalorder %s34, 1
      %p260 = por %p258, %p259
      %p261 = scmp.ne.s32.totalorder %s253, %s256
      %p262 = scmp.eq.s32.totalorder %s34, 0
      %p263 = por %p261, %p262
      %p264 = scmp.ne.s32.totalorder %s253, %s256
      %p265 = scmp.eq.s32.totalorder %s39, 1
      %p266 = por %p264, %p265
      %p267 = scmp.ne.s32.totalorder %s256, %s257
      %p268 = scmp.eq.s32.totalorder %s39, 0
      %p269 = por %p267, %p268
      %p270 = scmp.ne.s32.totalorder %s256, %s257
      %p271 = scmp.eq.s32.totalorder %s40, 1
      %p272 = por %p270, %p271
      %p274 = scmp.ne.s32.totalorder %s257, %s273
      %p275 = scmp.eq.s32.totalorder %s40, 0
      %p276 = por %p274, %p275
      %s277 = ssub.s32 %s34, %s41
      %p278 = scmp.eq.s32.totalorder %s277, 0
      %s280 = sadd.s32 %s279, 1
      %s281 = scalar_select %p278, %s279, %s280
      %p284 = pneg %p278
      %p285 = scmp.eq.s32.totalorder %s34, 1
      %p286 = por %p284, %p285
      %p287 = scmp.ne.s32.totalorder %s279, %s282
      %p288 = scmp.eq.s32.totalorder %s34, 0
      %p289 = por %p287, %p288
      %p290 = scmp.ne.s32.totalorder %s279, %s282
      %p291 = scmp.eq.s32.totalorder %s39, 1
      %p292 = por %p290, %p291
      %p293 = scmp.ne.s32.totalorder %s282, %s283
      %p294 = scmp.eq.s32.totalorder %s39, 0
      %p295 = por %p293, %p294
      %p296 = scmp.ne.s32.totalorder %s282, %s283
      %p297 = scmp.eq.s32.totalorder %s40, 1
      %p298 = por %p296, %p297
      %p300 = scmp.ne.s32.totalorder %s283, %s299
      %p301 = scmp.eq.s32.totalorder %s40, 0
      %p302 = por %p300, %p301
      %p303 = scmp.le.s32.totalorder 1, %s34
      %p304 = scmp.lt.s32.totalorder %s34, 3
      %p305 = pnand %p303, %p304
      %p306 = pneg %p305
      // Predicated region
      $region9: #{tpu_custom_call.1} parent=5 // pred_check
        _
      $region10: #{tpu_custom_call.1} parent=5 // pred_check_branch
        %308 = sbr.rel (%p305) target = $region12
      $region11: #{tpu_custom_call.1} parent=5 // pred_region
        %s309 = ssub.s32 %s34, 1
        // Predicated region
        $region13: #{tpu_custom_call.1} parent=11 // pred_check
          %p310 = pneg %p107
        $region14: #{tpu_custom_call.1} parent=11 // pred_check_branch
          %312 = sbr.rel (%p310) target = $region16
        $region15: #{tpu_custom_call.1} parent=11 // pred_region
          _
        $region16: #{tpu_custom_call.1} parent=11 // pred_fallthru
          _
        // Predicated region
        $region17: #{tpu_custom_call.1} parent=11 // pred_check
          %p313 = pneg %p128
        $region18: #{tpu_custom_call.1} parent=11 // pred_check_branch
          %315 = sbr.rel (%p313) target = $region20
        $region19: #{tpu_custom_call.1} parent=11 // pred_region
          %317 = vsyncadd [#allocation6], 0
          %s318 = sshll.u32 %s3, 4
          %s319 = int_to_ptr.hbm [resolvable:$true] %s318
          %s320 = sshll.u32 [#allocation7], 4
          %s321 = int_to_ptr.vmem [resolvable:$true] %s320
          %326 = dma.hbm_to_vmem [thread:$0]  %s319, 256, %s321, [#allocation6], 64, 64, 4
        $region20: #{tpu_custom_call.1} parent=11 // pred_fallthru
          _
        // Predicated region
        $region21: #{tpu_custom_call.1} parent=11 // pred_check
          %p327 = pneg %p149
        $region22: #{tpu_custom_call.1} parent=11 // pred_check_branch
          %329 = sbr.rel (%p327) target = $region24
        $region23: #{tpu_custom_call.1} parent=11 // pred_region
          %331 = vsyncadd [#allocation9], 0
          %s332 = sshll.u32 %s4, 4
          %s333 = int_to_ptr.hbm [resolvable:$true] %s332
          %s334 = sshll.u32 [#allocation8], 4
          %s335 = int_to_ptr.vmem [resolvable:$true] %s334
          %340 = dma.hbm_to_vmem [thread:$0]  %s333, 256, %s335, [#allocation9], 64, 64, 4
        $region24: #{tpu_custom_call.1} parent=11 // pred_fallthru
          _
        // Predicated region
        $region25: #{tpu_custom_call.1} parent=11 // pred_check
          %p341 = pneg %p170
        $region26: #{tpu_custom_call.1} parent=11 // pred_check_branch
          %343 = sbr.rel (%p341) target = $region28
        $region27: #{tpu_custom_call.1} parent=11 // pred_region
          %345 = vsyncadd [#allocation9], 0
          %s346 = sshll.u32 %s5, 4
          %s347 = int_to_ptr.hbm [resolvable:$true] %s346
          %s348 = sshll.u32 [#allocation10], 4
          %s349 = int_to_ptr.vmem [resolvable:$true] %s348
          %354 = dma.hbm_to_vmem [thread:$0]  %s347, 256, %s349, [#allocation9], 64, 64, 4
        $region28: #{tpu_custom_call.1} parent=11 // pred_fallthru
          _
        // Predicated region
        $region29: #{tpu_custom_call.1} parent=11 // pred_check
          %p355 = pneg %p191
        $region30: #{tpu_custom_call.1} parent=11 // pred_check_branch
          %357 = sbr.rel (%p355) target = $region32
        $region31: #{tpu_custom_call.1} parent=11 // pred_region
          %359 = vsyncadd [#allocation12], 0
          %s360 = sshll.u32 %s6, 4
          %s361 = int_to_ptr.hbm [resolvable:$true] %s360
          %s362 = sshll.u32 [#allocation11], 4
          %s363 = int_to_ptr.vmem [resolvable:$true] %s362
          %368 = dma.hbm_to_vmem [thread:$0]  %s361, 256, %s363, [#allocation12], 64, 64, 4
        $region32: #{tpu_custom_call.1} parent=11 // pred_fallthru
          _
      $region12: #{tpu_custom_call.1} parent=5 // pred_fallthru
        _
      %p369 = scmp.lt.s32.totalorder %s34, 2
      // Predicated region
      $region33: #{tpu_custom_call.1} parent=5 // pred_check
        %p370 = pneg %p369
      $region34: #{tpu_custom_call.1} parent=5 // pred_check_branch
        %372 = sbr.rel (%p370) target = $region36
      $region35: #{tpu_custom_call.1} parent=5 // pred_region
        // Predicated region
        $region37: #{tpu_custom_call.1} parent=35 // pred_check
          %p373 = pneg %p54
        $region38: #{tpu_custom_call.1} parent=35 // pred_check_branch
          %375 = sbr.rel (%p373) target = $region40
        $region39: #{tpu_custom_call.1} parent=35 // pred_region
          %s376 = sand.u32 %s44, 1
          %s377 = scalar_lea.sflag [#allocation3], %s376
          %s378 = sand.u32 %s44, 1
          %s379 = smul.addr %s378, 16
          %s380 = scalar_lea.vmem [#allocation2], %s379
          %382 = vsyncadd %s377, 0
          %s383 = smul.addr %s34, 2
          %s384 = smul.addr %s383, 8
          %s385 = scalar_lea.hbm %s0, %s384
          %s386 = sshll.u32 %s385, 4
          %s387 = int_to_ptr.hbm [resolvable:$true] %s386
          %s388 = sshll.u32 %s380, 4
          %s389 = int_to_ptr.vmem [resolvable:$true] %s388
          %394 = dma.hbm_to_vmem [thread:$0]  %s387, 256, %s389, %s377, 128, 128, 8
        $region40: #{tpu_custom_call.1} parent=35 // pred_fallthru
          _
        // Predicated region
        $region41: #{tpu_custom_call.1} parent=35 // pred_check
          %p395 = pneg %p80
        $region42: #{tpu_custom_call.1} parent=35 // pred_check_branch
          %397 = sbr.rel (%p395) target = $region44
        $region43: #{tpu_custom_call.1} parent=35 // pred_region
          %s398 = sand.u32 %s34, 1
          %s399 = scalar_lea.sflag [#allocation6], %s398
          %s400 = sand.u32 %s70, 1
          %s401 = smul.addr %s400, 16
          %s402 = scalar_lea.vmem [#allocation5], %s401
          %404 = vsyncadd %s399, 0
          %s405 = smul.addr %s34, 2
          %s406 = smul.addr %s405, 8
          %s407 = scalar_lea.hbm %s1, %s406
          %s408 = sshll.u32 %s407, 4
          %s409 = int_to_ptr.hbm [resolvable:$true] %s408
          %s410 = sshll.u32 %s402, 4
          %s411 = int_to_ptr.vmem [resolvable:$true] %s410
          %416 = dma.hbm_to_vmem [thread:$0]  %s409, 256, %s411, %s399, 128, 128, 8
        $region44: #{tpu_custom_call.1} parent=35 // pred_fallthru
          _
      $region36: #{tpu_custom_call.1} parent=5 // pred_fallthru
        _
      %p417 = scmp.le.s32.totalorder 1, %s34
      %p418 = scmp.lt.s32.totalorder %s34, 3
      %p419 = pnand %p417, %p418
      %p420 = pneg %p419
      // Predicated region
      $region45: #{tpu_custom_call.1} parent=5 // pred_check
        _
      $region46: #{tpu_custom_call.1} parent=5 // pred_check_branch
        %422 = sbr.rel (%p419) target = $region48
      $region47: #{tpu_custom_call.1} parent=5 // pred_region
        %s423 = ssub.s32 %s34, 1
        %s424 = sand.u32 %s47, 1
        %s425 = scalar_lea.sflag [#allocation3], %s424
        %s426 = sand.u32 %s47, 1
        %s427 = smul.addr %s426, 16
        %s428 = scalar_lea.vmem [#allocation2], %s427
        // Predicated region
        $region49: #{tpu_custom_call.1} parent=47 // pred_check
          %p429 = pneg %p60
        $region50: #{tpu_custom_call.1} parent=47 // pred_check_branch
          %431 = sbr.rel (%p429) target = $region52
        $region51: #{tpu_custom_call.1} parent=47 // pred_region
          %433 = dma.done %s425, 256
        $region52: #{tpu_custom_call.1} parent=47 // pred_fallthru
          _
        %s434 = sand.u32 %s39, 1
        %s435 = scalar_lea.sflag [#allocation6], %s434
        %s436 = sand.u32 %s73, 1
        %s437 = smul.addr %s436, 16
        %s438 = scalar_lea.vmem [#allocation5], %s437
        // Predicated region
        $region53: #{tpu_custom_call.1} parent=47 // pred_check
          %p439 = pneg %p86
        $region54: #{tpu_custom_call.1} parent=47 // pred_check_branch
          %441 = sbr.rel (%p439) target = $region56
        $region55: #{tpu_custom_call.1} parent=47 // pred_region
          %443 = dma.done %s435, 256
        $region56: #{tpu_custom_call.1} parent=47 // pred_fallthru
          _
        // Predicated region
        $region57: #{tpu_custom_call.1} parent=47 // pred_check
          %p444 = pneg %p128
        $region58: #{tpu_custom_call.1} parent=47 // pred_check_branch
          %446 = sbr.rel (%p444) target = $region60
        $region59: #{tpu_custom_call.1} parent=47 // pred_region
          %448 = dma.done [#allocation6], 256
        $region60: #{tpu_custom_call.1} parent=47 // pred_fallthru
          _
        // Predicated region
        $region61: #{tpu_custom_call.1} parent=47 // pred_check
          %p449 = pneg %p149
        $region62: #{tpu_custom_call.1} parent=47 // pred_check_branch
          %451 = sbr.rel (%p449) target = $region64
        $region63: #{tpu_custom_call.1} parent=47 // pred_region
          %453 = dma.done [#allocation9], 256
        $region64: #{tpu_custom_call.1} parent=47 // pred_fallthru
          _
        // Predicated region
        $region65: #{tpu_custom_call.1} parent=47 // pred_check
          %p454 = pneg %p170
        $region66: #{tpu_custom_call.1} parent=47 // pred_check_branch
          %456 = sbr.rel (%p454) target = $region68
        $region67: #{tpu_custom_call.1} parent=47 // pred_region
          %458 = dma.done [#allocation9], 256
        $region68: #{tpu_custom_call.1} parent=47 // pred_fallthru
          _
        // Predicated region
        $region69: #{tpu_custom_call.1} parent=47 // pred_check
          %p459 = pneg %p191
        $region70: #{tpu_custom_call.1} parent=47 // pred_check_branch
          %461 = sbr.rel (%p459) target = $region72
        $region71: #{tpu_custom_call.1} parent=47 // pred_region
          %463 = dma.done [#allocation12], 256
        $region72: #{tpu_custom_call.1} parent=47 // pred_fallthru
          _
        %s464 = sand.u32 %s47, 1
        %s465 = scalar_lea.sflag [#allocation3], %s464
        %s466 = sand.u32 %s47, 1
        %s467 = smul.addr %s466, 16
        %s468 = scalar_lea.vmem [#allocation2], %s467
        %p469 = pneg %p60
        %p470 = pneg %p57
        %s471 = sand.u32 %s39, 1
        %s472 = scalar_lea.sflag [#allocation6], %s471
        %s473 = sand.u32 %s73, 1
        %s474 = smul.addr %s473, 16
        %s475 = scalar_lea.vmem [#allocation5], %s474
        %p476 = pneg %p86
        %p477 = pneg %p83
        %p478 = pneg %p107
        %p479 = pneg %p104
        %p480 = pneg %p128
        %p481 = pneg %p125
        %p482 = pneg %p149
        %p483 = pneg %p146
        %p484 = pneg %p170
        %p485 = pneg %p167
        %p486 = pneg %p191
        %p487 = pneg %p188
        %p488 = pneg %p217
        %p489 = pneg %p214
        %s490 = sand.u32 %s204, 1
        %s491 = scalar_lea.sflag [#allocation4], %s490
        %s492 = sand.u32 %s204, 1
        %s493 = smul.addr %s492, 8
        %s494 = scalar_lea.vmem [#allocation13], %s493
        %p495 = pneg %p243
        %p496 = pneg %p240
        %s497 = sand.u32 %s39, 1
        %s498 = scalar_lea.sflag [#allocation15], %s497
        %s499 = sand.u32 %s230, 1
        %s500 = smul.addr %s499, 8
        %s501 = scalar_lea.vmem [#allocation14], %s500
        %p502 = pneg %p269
        %p503 = pneg %p266
        %s504 = sand.u32 %s39, 1
        %s505 = scalar_lea.sflag [#allocation15], %s504
        %s506 = sand.u32 %s256, 1
        %s507 = smul.addr %s506, 8
        %s508 = scalar_lea.vmem [#allocation16], %s507
        %p509 = pneg %p295
        %p510 = pneg %p292
        %s511 = sand.u32 %s282, 1
        %s512 = scalar_lea.sflag [#allocation18], %s511
        %s513 = sand.u32 %s282, 1
        %s514 = smul.addr %s513, 8
        %s515 = scalar_lea.vmem [#allocation17], %s514
        %v517 = vld [vmem:[%s428] sm:$0xff]
        %v518 = vld [vmem:[%s428 + $0x8] sm:$0xff]
        %v519 = vld [vmem:[%s2] sm:$0x1]
        %vm520 = vcmask 261120
        %v521 = vsel %vm520, %v517, 0.0
        %522 = vadd.xlane.f32.xlu0 %v521
        %v523 = vpop.xlane.xlu0 %522
        %v524 = vsel %vm520, %v518, 0.0
        %525 = vadd.xlane.f32.xlu0 %v524
        %v526 = vpop.xlane.xlu0 %525
        %v527 = vrcp.pop 32.0
        %v528 = vmul.f32 32.0, %v527
        %v529 = vsub.f32 1.0, %v528
        %v530 = vmul.f32 %v527, %v529
        %v531 = vadd.f32 %v527, %v530
        %vm532 = vweird.f32 %v527
        %v533 = vsel %vm532, %v527, %v531
        %v534 = vmul.f32 %v523, %v533
        %v535 = vmul.f32 %v526, %v533
        %v536 = vsub.f32 %v517, %v534
        %v537 = vsub.f32 %v518, %v535
        %v538 = vmul.f32 %v536, %v536
        %v539 = vmul.f32 %v537, %v537
        %v540 = vsel %vm520, %v538, 0.0
        %541 = vadd.xlane.f32.xlu0 %v540
        %v542 = vpop.xlane.xlu0 %541
        %v543 = vsel %vm520, %v539, 0.0
        %544 = vadd.xlane.f32.xlu0 %v543
        %v545 = vpop.xlane.xlu0 %544
        %v546 = vmul.f32 %v542, %v533
        %v547 = vmul.f32 %v545, %v533
        %v548 = vadd.f32 %v546, 1e-05
        %v549 = vadd.f32 %v547, 1e-05
        %v550 = vrsqrt.pop %v548
        %v551 = vmul.f32 %v550, %v548
        %v552 = vmul.f32 %v551, %v550
        %v553 = vmul.f32 0.5, %v552
        %v554 = vsub.f32 1.5, %v553
        %v555 = vmul.f32 %v550, %v554
        %vm556 = vweird.f32 %v548
        %vm557 = vweird.f32 %v550
        %vm558 = vmor %vm556, %vm557
        %v559 = vsel %vm558, %v550, %v555
        %v560 = vrsqrt.pop %v549
        %v561 = vmul.f32 %v560, %v549
        %v562 = vmul.f32 %v561, %v560
        %v563 = vmul.f32 0.5, %v562
        %v564 = vsub.f32 1.5, %v563
        %v565 = vmul.f32 %v560, %v564
        %vm566 = vweird.f32 %v549
        %vm567 = vweird.f32 %v560
        %vm568 = vmor %vm566, %vm567
        %v569 = vsel %vm568, %v560, %v565
        %v570 = vmul.f32 %v536, %v559
        %v571 = vmul.f32 %v537, %v569
        %v573 = vperm.slane %v519, 0
        %v575 = vmul.f32 %v570, %v573
        %v576 = vmul.f32 %v571, %v573
        %v577 = vpack.c.bf16 %v576, %v575
        %v578 = vld [vmem:[#allocation7] sm:$0xf]
        %v579 = vld [vmem:[#allocation7 + $0x4] sm:$0xf]
        %v580 = vld [vmem:[#allocation7 + $0x8] sm:$0xf]
        %v581 = vld [vmem:[#allocation7 + $0xc] sm:$0xf]
        %v586 = vunpack.c.l.b16 %v578
        %v587 = vunpack.c.l.b16 %v579
        %v588 = vunpack.c.l.b16 %v580
        %v589 = vunpack.c.l.b16 %v581
        %v590 = vpack.c.b16 %v587, %v586
        %v591 = vpack.c.b16 %v589, %v588
        %v595 = vsel %vm520, %v577, 0
        %597 = vmatpush.bf16.msra.mxu0 0
        %598 = vmatpush.bf16.msra.mxu0 0
        %599 = vmatpush.bf16.msra.mxu0 0
        %600 = vmatpush.bf16.msra.mxu0 0
        %601 = vmatpush.bf16.msra.mxu0 0
        %602 = vmatpush.bf16.msra.mxu0 0
        %603 = vmatpush.bf16.msra.mxu0 %v591
        %604 = vmatpush.bf16.msra.mxu0 %v590
        %605 = vmatmul.bf16.gmra.mxu0 %v595
        %v606 = vpop.f32.mrf.mxu0
        %v607 = vadd.f32 0.0, %v606
        %v608 = vpop.f32.mrf.mxu0
        %v609 = vadd.f32 0.0, %v608
        %610 = vdwg.mxu0
        %v611 = vpack.c.bf16 %v607, %v607
        %v612 = vpack.c.bf16 %v609, %v609
        %vm613 = vcmask 257024
        %614 = vst.msk [vmem:[%s494] sm:$0xf] %vm613, %v611
        %615 = vst.msk [vmem:[%s494 + $0x4] sm:$0xf] %vm613, %v612
        %v616 = vld [vmem:[#allocation8] sm:$0xf]
        %v617 = vld [vmem:[#allocation8 + $0x4] sm:$0xf]
        %v618 = vld [vmem:[#allocation8 + $0x8] sm:$0xf]
        %v619 = vld [vmem:[#allocation8 + $0xc] sm:$0xf]
        %v624 = vunpack.c.l.b16 %v616
        %v625 = vunpack.c.l.b16 %v617
        %v626 = vunpack.c.l.b16 %v618
        %v627 = vunpack.c.l.b16 %v619
        %v628 = vpack.c.b16 %v625, %v624
        %v629 = vpack.c.b16 %v627, %v626
        %632 = vmatpush.bf16.msra.mxu0 0
        %633 = vmatpush.bf16.msra.mxu0 0
        %634 = vmatpush.bf16.msra.mxu0 0
        %635 = vmatpush.bf16.msra.mxu0 0
        %636 = vmatpush.bf16.msra.mxu0 0
        %637 = vmatpush.bf16.msra.mxu0 0
        %638 = vmatpush.bf16.msra.mxu0 %v629
        %639 = vmatpush.bf16.msra.mxu0 %v628
        %640 = vmatmul.bf16.gmra.mxu0 %v595
        %v641 = vpop.f32.mrf.mxu0
        %v642 = vadd.f32 0.0, %v641
        %v643 = vpop.f32.mrf.mxu0
        %v644 = vadd.f32 0.0, %v643
        %645 = vdwg.mxu0
        %v646 = vpack.c.bf16 %v642, %v642
        %v647 = vpack.c.bf16 %v644, %v644
        %648 = vst.msk [vmem:[%s501] sm:$0xf] %vm613, %v646
        %649 = vst.msk [vmem:[%s501 + $0x4] sm:$0xf] %vm613, %v647
        %v650 = vld [vmem:[%s438] sm:$0xff]
        %v651 = vld [vmem:[%s438 + $0x8] sm:$0xff]
        %v652 = vpack.c.bf16 %v651, %v650
        %v653 = vld [vmem:[#allocation10] sm:$0xf]
        %v654 = vld [vmem:[#allocation10 + $0x4] sm:$0xf]
        %v655 = vld [vmem:[#allocation10 + $0x8] sm:$0xf]
        %v656 = vld [vmem:[#allocation10 + $0xc] sm:$0xf]
        %v661 = vunpack.c.l.b16 %v653
        %v662 = vunpack.c.l.b16 %v654
        %v663 = vunpack.c.l.b16 %v655
        %v664 = vunpack.c.l.b16 %v656
        %v665 = vpack.c.b16 %v662, %v661
        %v666 = vpack.c.b16 %v664, %v663
        %v670 = vsel %vm520, %v652, 0
        %672 = vmatpush.bf16.msra.mxu0 0
        %673 = vmatpush.bf16.msra.mxu0 0
        %674 = vmatpush.bf16.msra.mxu0 0
        %675 = vmatpush.bf16.msra.mxu0 0
        %676 = vmatpush.bf16.msra.mxu0 0
        %677 = vmatpush.bf16.msra.mxu0 0
        %678 = vmatpush.bf16.msra.mxu0 %v666
        %679 = vmatpush.bf16.msra.mxu0 %v665
        %680 = vmatmul.bf16.gmra.mxu0 %v670
        %v681 = vpop.f32.mrf.mxu0
        %v682 = vadd.f32 0.0, %v681
        %v683 = vpop.f32.mrf.mxu0
        %v684 = vadd.f32 0.0, %v683
        %685 = vdwg.mxu0
        %v686 = vpack.c.bf16 %v682, %v682
        %v687 = vpack.c.bf16 %v684, %v684
        %688 = vst.msk [vmem:[%s508] sm:$0xf] %vm613, %v686
        %689 = vst.msk [vmem:[%s508 + $0x4] sm:$0xf] %vm613, %v687
        %v690 = vld [vmem:[#allocation11] sm:$0xf]
        %v691 = vld [vmem:[#allocation11 + $0x4] sm:$0xf]
        %v692 = vld [vmem:[#allocation11 + $0x8] sm:$0xf]
        %v693 = vld [vmem:[#allocation11 + $0xc] sm:$0xf]
        %v698 = vunpack.c.l.b16 %v690
        %v699 = vunpack.c.l.b16 %v691
        %v700 = vunpack.c.l.b16 %v692
        %v701 = vunpack.c.l.b16 %v693
        %v702 = vpack.c.b16 %v699, %v698
        %v703 = vpack.c.b16 %v701, %v700
        %706 = vmatpush.bf16.msra.mxu0 0
        %707 = vmatpush.bf16.msra.mxu0 0
        %708 = vmatpush.bf16.msra.mxu0 0
        %709 = vmatpush.bf16.msra.mxu0 0
        %710 = vmatpush.bf16.msra.mxu0 0
        %711 = vmatpush.bf16.msra.mxu0 0
        %712 = vmatpush.bf16.msra.mxu0 %v703
        %713 = vmatpush.bf16.msra.mxu0 %v702
        %714 = vmatmul.bf16.gmra.mxu0 %v670
        %v715 = vpop.f32.mrf.mxu0
        %v716 = vadd.f32 0.0, %v715
        %v717 = vpop.f32.mrf.mxu0
        %v718 = vadd.f32 0.0, %v717
        %719 = vdwg.mxu0
        %v720 = vpack.c.bf16 %v716, %v716
        %v721 = vpack.c.bf16 %v718, %v718
        %722 = vst.msk [vmem:[%s515] sm:$0xf] %vm613, %v720
        %723 = vst.msk [vmem:[%s515 + $0x4] sm:$0xf] %vm613, %v721
        %s724 = sand.u32 %s204, 1
        %s725 = scalar_lea.sflag [#allocation4], %s724
        %s726 = sand.u32 %s204, 1
        %s727 = smul.addr %s726, 8
        %s728 = scalar_lea.vmem [#allocation13], %s727
        %s729 = sand.u32 %s39, 1
        %s730 = scalar_lea.sflag [#allocation15], %s729
        %s731 = sand.u32 %s230, 1
        %s732 = smul.addr %s731, 8
        %s733 = scalar_lea.vmem [#allocation14], %s732
        %s734 = sand.u32 %s39, 1
        %s735 = scalar_lea.sflag [#allocation15], %s734
        %s736 = sand.u32 %s256, 1
        %s737 = smul.addr %s736, 8
        %s738 = scalar_lea.vmem [#allocation16], %s737
        %s739 = sand.u32 %s282, 1
        %s740 = scalar_lea.sflag [#allocation18], %s739
        %s741 = sand.u32 %s282, 1
        %s742 = smul.addr %s741, 8
        %s743 = scalar_lea.vmem [#allocation17], %s742
        // Predicated region
        $region73: #{tpu_custom_call.1} parent=47 // pred_check
          %p744 = pneg %p214
        $region74: #{tpu_custom_call.1} parent=47 // pred_check_branch
          %746 = sbr.rel (%p744) target = $region76
        $region75: #{tpu_custom_call.1} parent=47 // pred_region
          %748 = vsyncadd %s725, 0
          %s749 = smul.addr %s39, 2
          %s750 = smul.addr %s749, 4
          %s751 = scalar_lea.hbm %s7, %s750
          %s752 = sshll.u32 %s728, 4
          %s753 = int_to_ptr.vmem [resolvable:$true] %s752
          %s754 = sshll.u32 %s751, 4
          %s755 = int_to_ptr.hbm [resolvable:$true] %s754
          %760 = dma.vmem_to_hbm [thread:$0]  %s753, 128, %s755, %s725, 64, 64, 4
        $region76: #{tpu_custom_call.1} parent=47 // pred_fallthru
          _
        // Predicated region
        $region77: #{tpu_custom_call.1} parent=47 // pred_check
          %p761 = pneg %p240
        $region78: #{tpu_custom_call.1} parent=47 // pred_check_branch
          %763 = sbr.rel (%p761) target = $region80
        $region79: #{tpu_custom_call.1} parent=47 // pred_region
          %765 = vsyncadd %s730, 0
          %s766 = smul.addr %s39, 2
          %s767 = smul.addr %s766, 4
          %s768 = scalar_lea.hbm %s8, %s767
          %s769 = sshll.u32 %s733, 4
          %s770 = int_to_ptr.vmem [resolvable:$true] %s769
          %s771 = sshll.u32 %s768, 4
          %s772 = int_to_ptr.hbm [resolvable:$true] %s771
          %777 = dma.vmem_to_hbm [thread:$0]  %s770, 128, %s772, %s730, 64, 64, 4
        $region80: #{tpu_custom_call.1} parent=47 // pred_fallthru
          _
        // Predicated region
        $region81: #{tpu_custom_call.1} parent=47 // pred_check
          %p778 = pneg %p266
        $region82: #{tpu_custom_call.1} parent=47 // pred_check_branch
          %780 = sbr.rel (%p778) target = $region84
        $region83: #{tpu_custom_call.1} parent=47 // pred_region
          %782 = vsyncadd %s735, 0
          %s783 = smul.addr %s39, 2
          %s784 = smul.addr %s783, 4
          %s785 = scalar_lea.hbm %s9, %s784
          %s786 = sshll.u32 %s738, 4
          %s787 = int_to_ptr.vmem [resolvable:$true] %s786
          %s788 = sshll.u32 %s785, 4
          %s789 = int_to_ptr.hbm [resolvable:$true] %s788
          %794 = dma.vmem_to_hbm [thread:$0]  %s787, 128, %s789, %s735, 64, 64, 4
        $region84: #{tpu_custom_call.1} parent=47 // pred_fallthru
          _
        // Predicated region
        $region85: #{tpu_custom_call.1} parent=47 // pred_check
          %p795 = pneg %p292
        $region86: #{tpu_custom_call.1} parent=47 // pred_check_branch
          %797 = sbr.rel (%p795) target = $region88
        $region87: #{tpu_custom_call.1} parent=47 // pred_region
          %799 = vsyncadd %s740, 0
          %s800 = smul.addr %s39, 2
          %s801 = smul.addr %s800, 4
          %s802 = scalar_lea.hbm %s10, %s801
          %s803 = sshll.u32 %s743, 4
          %s804 = int_to_ptr.vmem [resolvable:$true] %s803
          %s805 = sshll.u32 %s802, 4
          %s806 = int_to_ptr.hbm [resolvable:$true] %s805
          %811 = dma.vmem_to_hbm [thread:$0]  %s804, 128, %s806, %s740, 64, 64, 4
        $region88: #{tpu_custom_call.1} parent=47 // pred_fallthru
          _
      $region48: #{tpu_custom_call.1} parent=5 // pred_fallthru
        _
      %p812 = scmp.le.s32.totalorder 2, %s34
      // Predicated region
      $region89: #{tpu_custom_call.1} parent=5 // pred_check
        %p813 = pneg %p812
      $region90: #{tpu_custom_call.1} parent=5 // pred_check_branch
        %815 = sbr.rel (%p813) target = $region92
      $region91: #{tpu_custom_call.1} parent=5 // pred_region
        %s816 = ssub.s32 %s34, 2
        // Predicated region
        $region93: #{tpu_custom_call.1} parent=91 // pred_check
          %p817 = pneg %p220
        $region94: #{tpu_custom_call.1} parent=91 // pred_check_branch
          %819 = sbr.rel (%p817) target = $region96
        $region95: #{tpu_custom_call.1} parent=91 // pred_region
          %s820 = sand.u32 %s205, 1
          %s821 = scalar_lea.sflag [#allocation4], %s820
          %s822 = sand.u32 %s205, 1
          %s823 = smul.addr %s822, 8
          %s824 = scalar_lea.vmem [#allocation13], %s823
          %826 = dma.done %s821, 128
        $region96: #{tpu_custom_call.1} parent=91 // pred_fallthru
          _
        // Predicated region
        $region97: #{tpu_custom_call.1} parent=91 // pred_check
          %p827 = pneg %p246
        $region98: #{tpu_custom_call.1} parent=91 // pred_check_branch
          %829 = sbr.rel (%p827) target = $region100
        $region99: #{tpu_custom_call.1} parent=91 // pred_region
          %s830 = sand.u32 %s40, 1
          %s831 = scalar_lea.sflag [#allocation15], %s830
          %s832 = sand.u32 %s231, 1
          %s833 = smul.addr %s832, 8
          %s834 = scalar_lea.vmem [#allocation14], %s833
          %836 = dma.done %s831, 128
        $region100: #{tpu_custom_call.1} parent=91 // pred_fallthru
          _
        // Predicated region
        $region101: #{tpu_custom_call.1} parent=91 // pred_check
          %p837 = pneg %p272
        $region102: #{tpu_custom_call.1} parent=91 // pred_check_branch
          %839 = sbr.rel (%p837) target = $region104
        $region103: #{tpu_custom_call.1} parent=91 // pred_region
          %s840 = sand.u32 %s40, 1
          %s841 = scalar_lea.sflag [#allocation15], %s840
          %s842 = sand.u32 %s257, 1
          %s843 = smul.addr %s842, 8
          %s844 = scalar_lea.vmem [#allocation16], %s843
          %846 = dma.done %s841, 128
        $region104: #{tpu_custom_call.1} parent=91 // pred_fallthru
          _
        // Predicated region
        $region105: #{tpu_custom_call.1} parent=91 // pred_check
          %p847 = pneg %p298
        $region106: #{tpu_custom_call.1} parent=91 // pred_check_branch
          %849 = sbr.rel (%p847) target = $region108
        $region107: #{tpu_custom_call.1} parent=91 // pred_region
          %s850 = sand.u32 %s283, 1
          %s851 = scalar_lea.sflag [#allocation18], %s850
          %s852 = sand.u32 %s283, 1
          %s853 = smul.addr %s852, 8
          %s854 = scalar_lea.vmem [#allocation17], %s853
          %856 = dma.done %s851, 128
        $region108: #{tpu_custom_call.1} parent=91 // pred_fallthru
          _
      $region92: #{tpu_custom_call.1} parent=5 // pred_fallthru
        _
    $region6: #{tpu_custom_call.1} parent=1 // loop_footer
      %s38 = sadd.s32 1, %s34
    $region7: #{tpu_custom_call.1} parent=1 // loop_footer_branch
      %33 = sbr.rel target = $region3
    $region8: #{tpu_custom_call.1} parent=1 // loop_exit
      _
    %857 = vsyncpa [#allocation3], 1
    %s858 = scalar_lea.sflag [#allocation3], 1
    %859 = vsyncpa %s858, 1
    %860 = vsyncpa [#allocation6], 1
    %s861 = scalar_lea.sflag [#allocation6], 1
    %862 = vsyncpa %s861, 1
    %863 = vsyncpa [#allocation9], 1
    %864 = vsyncpa [#allocation12], 1
    %865 = vsyncpa [#allocation4], 1
    %s866 = scalar_lea.sflag [#allocation4], 1
    %867 = vsyncpa %s866, 1
    %868 = vsyncpa [#allocation15], 1
    %s869 = scalar_lea.sflag [#allocation15], 1
    %870 = vsyncpa %s869, 1
    %871 = vsyncpa [#allocation18], 1
    %s872 = scalar_lea.sflag [#allocation18], 1
    %873 = vsyncpa %s872, 1

</llo_original>
